<compile_context>
chip_gen: v7x
topology: tpu7x:2x2x1
jax: 0.10.0
libtpu: 0.0.40
codegen_flags: <defaults>
</compile_context>

<pallas_src>
import jax
import jax.numpy as jnp
import numpy as np
from jax.experimental import pallas as pl
from jax.experimental.pallas import tpu as pltpu

IN_DIM = 16
MEM_DIM = 32
MAX_CHILDREN = 7          # +1 row for child_h_sum -> (8, MEM_DIM) sublane-aligned h-stack
SEQ_LEN = 8


# ----------------------------------------------------------------------------
# Pallas kernel: whole tree, one grid step per node (topological order)
# ----------------------------------------------------------------------------
def tree_lstm_kernel(
    node_idx_ref,    # SMEM (num_nodes,)              int32
    child_ids_ref,   # SMEM (num_nodes, MAX_CHILDREN) int32 (sentinel = num_nodes)
    inputs_ref,      # VMEM (SEQ_LEN, 1, IN_DIM)      token embeddings (resident)
    wx_ref,          # VMEM (IN_DIM, 4*MEM_DIM)       [W_ioux | W_fx]
    bx_ref,          # VMEM (1, 4*MEM_DIM)            [b_ioux + b_iouh | b_fx]
    wh_ref,          # VMEM (MEM_DIM, 4*MEM_DIM)      [W_iouh | W_fh]
    bfh_ref,         # VMEM (1, MEM_DIM)              b_fh
    state_ref,       # out  (num_nodes + 1, 1, 2*MEM_DIM)  [c | h] per node; last row = zero sentinel
):
    n = pl.program_id(0)

    # Zero the whole state buffer (incl. the sentinel row) before the first node.
    @pl.when(n == 0)
    def _():
        state_ref[...] = jnp.zeros_like(state_ref)

    # Gather this node's embedding row and its children's (c|h) states.
    x = inputs_ref[node_idx_ref[n]]                                    # (1, IN_DIM)
    rows = [state_ref[child_ids_ref[n, k]] for k in range(MAX_CHILDREN)]  # each (1, 2*MEM)
    child_ch = jnp.concatenate(rows, axis=0)                           # (K, 2*MEM)
    child_c = child_ch[:, :MEM_DIM]                                    # (K, MEM)
    child_h = child_ch[:, MEM_DIM:]                                    # (K, MEM)
    child_h_sum = jnp.sum(child_h, axis=0, keepdims=True)              # (1, MEM)

    # Two fused, 128-lane-wide matmuls per node.
    h_stack = jnp.concatenate([child_h_sum, child_h], axis=0)          # (K+1, MEM) = (8, 32)
    xo = jnp.dot(x, wx_ref[...], preferred_element_type=jnp.float32) + bx_ref[...]   # (1, 4*MEM)
    ho = jnp.dot(h_stack, wh_ref[...], preferred_element_type=jnp.float32)           # (K+1, 4*MEM)

    # iou = ioux(x) + iouh(child_h_sum)   (both biases already folded into bx)
    iou = xo[:, :3 * MEM_DIM] + ho[0:1, :3 * MEM_DIM]                  # (1, 3*MEM)
    i_g = jax.nn.sigmoid(iou[:, 0:MEM_DIM])
    o_g = jax.nn.sigmoid(iou[:, MEM_DIM:2 * MEM_DIM])
    u_g = jnp.tanh(iou[:, 2 * MEM_DIM:3 * MEM_DIM])

    # f = sigmoid(fh(child_h) + fx(x)); padded child rows have child_c == 0, so f*c == 0.
    f = jax.nn.sigmoid(ho[1:, 3 * MEM_DIM:] + bfh_ref[...] + xo[:, 3 * MEM_DIM:])    # (K, MEM)
    c = i_g * u_g + jnp.sum(f * child_c, axis=0, keepdims=True)        # (1, MEM)
    h = o_g * jnp.tanh(c)                                              # (1, MEM)

    state_ref[n] = jnp.concatenate([c, h], axis=1)                     # (1, 2*MEM)


# ----------------------------------------------------------------------------
# Wrapper: one pallas_call for the whole tree
# ----------------------------------------------------------------------------
@jax.jit
def tree_lstm_pallas(node_idx, child_ids, inputs, wx, bx, wh, bfh):
    num_nodes = node_idx.shape[0]
    seq_len = inputs.shape[0]
    n_state = num_nodes + 1                     # + sentinel zero row for padded children
    inputs3 = inputs.reshape(seq_len, 1, IN_DIM)

    grid_spec = pltpu.PrefetchScalarGridSpec(
        num_scalar_prefetch=2,
        grid=(num_nodes,),
        in_specs=[
            pl.BlockSpec((seq_len, 1, IN_DIM), lambda n, *_: (0, 0, 0)),   # embeddings (resident)
            pl.BlockSpec((IN_DIM, 4 * MEM_DIM), lambda n, *_: (0, 0)),     # wx (one-time DMA)
            pl.BlockSpec((1, 4 * MEM_DIM), lambda n, *_: (0, 0)),          # bx
            pl.BlockSpec((MEM_DIM, 4 * MEM_DIM), lambda n, *_: (0, 0)),    # wh
            pl.BlockSpec((1, MEM_DIM), lambda n, *_: (0, 0)),              # b_fh
        ],
        out_specs=pl.BlockSpec((n_state, 1, 2 * MEM_DIM), lambda n, *_: (0, 0, 0)),
    )
    return pl.pallas_call(
        tree_lstm_kernel,
        out_shape=jax.ShapeDtypeStruct((n_state, 1, 2 * MEM_DIM), jnp.float32),
        grid_spec=grid_spec,
        compiler_params=pltpu.CompilerParams(dimension_semantics=("arbitrary",)),
    )(node_idx, child_ids, inputs3, wx, bx, wh, bfh)


# ----------------------------------------------------------------------------
# Host-side glue: tree -> flat topological schedule (pure data-structure work)
# ----------------------------------------------------------------------------
class Tree:
    def __init__(self, idx, children=()):
        self.idx = idx
        self.children = list(children)
        self.num_children = len(self.children)
        self.state = None


def build_schedule(tree):
    """Post-order flatten: children always appear before their parent."""
    order = []

    def visit(t):
        for ch in t.children:
            visit(ch)
        t._pos = len(order)
        order.append(t)

    visit(tree)
    n = len(order)
    sentinel = n                                   # points at the zero row of the state buffer
    node_idx = np.array([t.idx for t in order], np.int32)
    child_ids = np.full((n, MAX_CHILDREN), sentinel, np.int32)
    for pos, t in enumerate(order):
        assert len(t.children) <= MAX_CHILDREN, "increase MAX_CHILDREN"
        for k, ch in enumerate(t.children):
            child_ids[pos, k] = ch._pos
    return node_idx, child_ids, order


# ----------------------------------------------------------------------------
# Pure-JAX reference (mirrors the PyTorch module exactly)
# ----------------------------------------------------------------------------
def node_forward_ref(x, child_c, child_h, params):
    (w_ioux, b_ioux, w_iouh, b_iouh, w_fx, b_fx, w_fh, b_fh) = params
    child_h_sum = jnp.sum(child_h, axis=0, keepdims=True)
    iou = x @ w_ioux + b_ioux + child_h_sum @ w_iouh + b_iouh
    i = jax.nn.sigmoid(iou[:, 0:MEM_DIM])
    o = jax.nn.sigmoid(iou[:, MEM_DIM:2 * MEM_DIM])
    u = jnp.tanh(iou[:, 2 * MEM_DIM:3 * MEM_DIM])
    f = jax.nn.sigmoid(child_h @ w_fh + b_fh + (x @ w_fx + b_fx))
    c = i * u + jnp.sum(f * child_c, axis=0, keepdims=True)
    h = o * jnp.tanh(c)
    return c, h


def tree_forward_ref(tree, inputs, params):
    states = {}

    def visit(t):
        for ch in t.children:
            visit(ch)
        if t.children:
            child_c = jnp.concatenate([states[id(ch)][0] for ch in t.children], axis=0)
            child_h = jnp.concatenate([states[id(ch)][1] for ch in t.children], axis=0)
        else:
            child_c = jnp.zeros((1, MEM_DIM), jnp.float32)
            child_h = jnp.zeros((1, MEM_DIM), jnp.float32)
        x = inputs[t.idx:t.idx + 1]
        states[id(t)] = node_forward_ref(x, child_c, child_h, params)

    visit(tree)
    return states


# ----------------------------------------------------------------------------
# Main
# ----------------------------------------------------------------------------
if __name__ == "__main__":
    key = jax.random.PRNGKey(0)
    keys = jax.random.split(key, 9)

    # Weights stored as (in_features, out_features) — same math as torch.nn.Linear.
    scale = 0.1
    w_ioux = scale * jax.random.normal(keys[0], (IN_DIM, 3 * MEM_DIM), jnp.float32)
    b_ioux = scale * jax.random.normal(keys[1], (1, 3 * MEM_DIM), jnp.float32)
    w_iouh = scale * jax.random.normal(keys[2], (MEM_DIM, 3 * MEM_DIM), jnp.float32)
    b_iouh = scale * jax.random.normal(keys[3], (1, 3 * MEM_DIM), jnp.float32)
    w_fx = scale * jax.random.normal(keys[4], (IN_DIM, MEM_DIM), jnp.float32)
    b_fx = scale * jax.random.normal(keys[5], (1, MEM_DIM), jnp.float32)
    w_fh = scale * jax.random.normal(keys[6], (MEM_DIM, MEM_DIM), jnp.float32)
    b_fh = scale * jax.random.normal(keys[7], (1, MEM_DIM), jnp.float32)
    params = (w_ioux, b_ioux, w_iouh, b_iouh, w_fx, b_fx, w_fh, b_fh)

    # Token embeddings: one row per tree node index.
    inputs = jax.random.normal(keys[8], (SEQ_LEN, IN_DIM), jnp.float32)

    # Small dependency tree:
    #        root(idx=0)
    #        /         \
    #    n1(idx=1)    n2(idx=2)
    #    /   \            \
    #  leaf3  leaf4       leaf5
    tree = Tree(0, [
        Tree(1, [Tree(3), Tree(4)]),
        Tree(2, [Tree(5)]),
    ])

    # Host: flatten topology once; device: one kernel launch for the whole tree.
    node_idx, child_ids, order = build_schedule(tree)

    # Fused weights (one-time concat on host).
    wx = jnp.concatenate([w_ioux, w_fx], axis=1)             # (IN_DIM, 4*MEM)
    bx = jnp.concatenate([b_ioux + b_iouh, b_fx], axis=1)    # (1, 4*MEM)
    wh = jnp.concatenate([w_iouh, w_fh], axis=1)             # (MEM, 4*MEM)
    bfh = b_fh                                               # (1, MEM)

    out = tree_lstm_pallas(jnp.asarray(node_idx), jnp.asarray(child_ids),
                           inputs, wx, bx, wh, bfh)
    out = jax.block_until_ready(out)
    out_np = np.asarray(out)

    # Reference check: compare every node's (c, h) against the pure-JAX recursion.
    states_ref = tree_forward_ref(tree, inputs, params)
    for pos, node in enumerate(order):
        c_ref, h_ref = states_ref[id(node)]
        np.testing.assert_allclose(out_np[pos, 0, :MEM_DIM], np.asarray(c_ref[0]),
                                   rtol=1e-5, atol=1e-5)
        np.testing.assert_allclose(out_np[pos, 0, MEM_DIM:], np.asarray(h_ref[0]),
                                   rtol=1e-5, atol=1e-5)

    # TODO(synk): for very large trees / many trees, batch independent nodes of a
    # level along the sublane (M) dimension and mark that axis "parallel" for v7x.

    print("KERNEL_OK")
</pallas_src>

<mosaic_0001>
module attributes {stable_mosaic.version = 11 : i64} {
  func.func @tree_lstm_kernel(%arg0: i32, %arg1: memref<6xi32, #tpu.memory_space<smem>>, %arg2: memref<6x7xi32, #tpu.memory_space<smem>>, %arg3: memref<8x1x16xf32, #tpu.memory_space<vmem>>, %arg4: memref<16x128xf32, #tpu.memory_space<vmem>>, %arg5: memref<1x128xf32, #tpu.memory_space<vmem>>, %arg6: memref<32x128xf32, #tpu.memory_space<vmem>>, %arg7: memref<1x32xf32, #tpu.memory_space<vmem>>, %arg8: memref<7x1x64xf32, #tpu.memory_space<vmem>>) attributes {dimension_semantics = [#tpu.dimension_semantics<arbitrary>], iteration_bounds = array<i64: 6>, scalar_prefetch = 2 : i64, scratch_operands = 0 : i64, tpu.core_type = #tpu.core_type<tc>, window_params = [{pipeline_mode = #tpu.pipeline_mode<synchronous>, transform_indices = @transform_0, window_bounds = array<i64: 8, 1, 16>}, {pipeline_mode = #tpu.pipeline_mode<synchronous>, transform_indices = @transform_1, window_bounds = array<i64: 16, 128>}, {pipeline_mode = #tpu.pipeline_mode<synchronous>, transform_indices = @transform_2, window_bounds = array<i64: 1, 128>}, {pipeline_mode = #tpu.pipeline_mode<synchronous>, transform_indices = @transform_3, window_bounds = array<i64: 32, 128>}, {pipeline_mode = #tpu.pipeline_mode<synchronous>, transform_indices = @transform_4, window_bounds = array<i64: 1, 32>}, {pipeline_mode = #tpu.pipeline_mode<synchronous>, transform_indices = @transform_5, window_bounds = array<i64: 7, 1, 64>}]} {
    %c0_i32 = arith.constant 0 : i32
    %0 = arith.cmpi eq, %arg0, %c0_i32 : i32
    %1 = arith.extui %0 : i1 to i32
    %c0_i32_0 = arith.constant 0 : i32
    %2 = arith.cmpi ne, %1, %c0_i32_0 : i32
    scf.if %2 {
      %cst_33 = arith.constant 0.000000e+00 : f32
      %96 = vector.broadcast %cst_33 : f32 to vector<7x1x64xf32>
      %c0_34 = arith.constant 0 : index
      %c0_35 = arith.constant 0 : index
      %c0_36 = arith.constant 0 : index
      %97 = vector.load %arg8[%c0_34, %c0_35, %c0_36] : memref<7x1x64xf32, #tpu.memory_space<vmem>>, vector<7x1x64xf32>
      tpu.vector_store %arg8[%c0_34, %c0_35, %c0_36], %96 {strides = array<i32>} : memref<7x1x64xf32, #tpu.memory_space<vmem>>, vector<7x1x64xf32>,
    } else {
    }
    %3 = arith.index_cast %arg0 : i32 to index
    %4 = memref.load %arg1[%3] : memref<6xi32, #tpu.memory_space<smem>>
    %5 = arith.index_cast %4 : i32 to index
    %c0 = arith.constant 0 : index
    %c0_1 = arith.constant 0 : index
    %6 = vector.load %arg3[%5, %c0, %c0_1] : memref<8x1x16xf32, #tpu.memory_space<vmem>>, vector<1x1x16xf32>
    %7 = vector.shape_cast %6 : vector<1x1x16xf32> to vector<1x16xf32>
    %8 = arith.index_cast %arg0 : i32 to index
    %c0_2 = arith.constant 0 : index
    %9 = memref.load %arg2[%8, %c0_2] : memref<6x7xi32, #tpu.memory_space<smem>>
    %10 = arith.index_cast %9 : i32 to index
    %c0_3 = arith.constant 0 : index
    %c0_4 = arith.constant 0 : index
    %11 = vector.load %arg8[%10, %c0_3, %c0_4] : memref<7x1x64xf32, #tpu.memory_space<vmem>>, vector<1x1x64xf32>
    %12 = vector.shape_cast %11 : vector<1x1x64xf32> to vector<1x64xf32>
    %13 = arith.index_cast %arg0 : i32 to index
    %c1 = arith.constant 1 : index
    %14 = memref.load %arg2[%13, %c1] : memref<6x7xi32, #tpu.memory_space<smem>>
    %15 = arith.index_cast %14 : i32 to index
    %c0_5 = arith.constant 0 : index
    %c0_6 = arith.constant 0 : index
    %16 = vector.load %arg8[%15, %c0_5, %c0_6] : memref<7x1x64xf32, #tpu.memory_space<vmem>>, vector<1x1x64xf32>
    %17 = vector.shape_cast %16 : vector<1x1x64xf32> to vector<1x64xf32>
    %18 = arith.index_cast %arg0 : i32 to index
    %c2 = arith.constant 2 : index
    %19 = memref.load %arg2[%18, %c2] : memref<6x7xi32, #tpu.memory_space<smem>>
    %20 = arith.index_cast %19 : i32 to index
    %c0_7 = arith.constant 0 : index
    %c0_8 = arith.constant 0 : index
    %21 = vector.load %arg8[%20, %c0_7, %c0_8] : memref<7x1x64xf32, #tpu.memory_space<vmem>>, vector<1x1x64xf32>
    %22 = vector.shape_cast %21 : vector<1x1x64xf32> to vector<1x64xf32>
    %23 = arith.index_cast %arg0 : i32 to index
    %c3 = arith.constant 3 : index
    %24 = memref.load %arg2[%23, %c3] : memref<6x7xi32, #tpu.memory_space<smem>>
    %25 = arith.index_cast %24 : i32 to index
    %c0_9 = arith.constant 0 : index
    %c0_10 = arith.constant 0 : index
    %26 = vector.load %arg8[%25, %c0_9, %c0_10] : memref<7x1x64xf32, #tpu.memory_space<vmem>>, vector<1x1x64xf32>
    %27 = vector.shape_cast %26 : vector<1x1x64xf32> to vector<1x64xf32>
    %28 = arith.index_cast %arg0 : i32 to index
    %c4 = arith.constant 4 : index
    %29 = memref.load %arg2[%28, %c4] : memref<6x7xi32, #tpu.memory_space<smem>>
    %30 = arith.index_cast %29 : i32 to index
    %c0_11 = arith.constant 0 : index
    %c0_12 = arith.constant 0 : index
    %31 = vector.load %arg8[%30, %c0_11, %c0_12] : memref<7x1x64xf32, #tpu.memory_space<vmem>>, vector<1x1x64xf32>
    %32 = vector.shape_cast %31 : vector<1x1x64xf32> to vector<1x64xf32>
    %33 = arith.index_cast %arg0 : i32 to index
    %c5 = arith.constant 5 : index
    %34 = memref.load %arg2[%33, %c5] : memref<6x7xi32, #tpu.memory_space<smem>>
    %35 = arith.index_cast %34 : i32 to index
    %c0_13 = arith.constant 0 : index
    %c0_14 = arith.constant 0 : index
    %36 = vector.load %arg8[%35, %c0_13, %c0_14] : memref<7x1x64xf32, #tpu.memory_space<vmem>>, vector<1x1x64xf32>
    %37 = vector.shape_cast %36 : vector<1x1x64xf32> to vector<1x64xf32>
    %38 = arith.index_cast %arg0 : i32 to index
    %c6 = arith.constant 6 : index
    %39 = memref.load %arg2[%38, %c6] : memref<6x7xi32, #tpu.memory_space<smem>>
    %40 = arith.index_cast %39 : i32 to index
    %c0_15 = arith.constant 0 : index
    %c0_16 = arith.constant 0 : index
    %41 = vector.load %arg8[%40, %c0_15, %c0_16] : memref<7x1x64xf32, #tpu.memory_space<vmem>>, vector<1x1x64xf32>
    %42 = vector.shape_cast %41 : vector<1x1x64xf32> to vector<1x64xf32>
    %43 = tpu.concatenate %12, %17, %22, %27, %32, %37, %42 in 0 : vector<1x64xf32>, vector<1x64xf32>, vector<1x64xf32>, vector<1x64xf32>, vector<1x64xf32>, vector<1x64xf32>, vector<1x64xf32> -> vector<7x64xf32>
    %44 = vector.extract_strided_slice %43 {offsets = [0, 0], sizes = [7, 32], strides = [1, 1]} : vector<7x64xf32> to vector<7x32xf32>
    %45 = vector.extract_strided_slice %43 {offsets = [0, 32], sizes = [7, 32], strides = [1, 1]} : vector<7x64xf32> to vector<7x32xf32>
    %cst = arith.constant dense<0.000000e+00> : vector<32xf32>
    %46 = vector.multi_reduction <add>, %45, %cst [0] : vector<7x32xf32> to vector<32xf32>
    %47 = vector.shape_cast %46 : vector<32xf32> to vector<1x32xf32>
    %48 = tpu.concatenate %47, %45 in 0 : vector<1x32xf32>, vector<7x32xf32> -> vector<8x32xf32>
    %c0_17 = arith.constant 0 : index
    %c0_18 = arith.constant 0 : index
    %49 = vector.load %arg4[%c0_17, %c0_18] : memref<16x128xf32, #tpu.memory_space<vmem>>, vector<16x128xf32>
    %cst_19 = arith.constant dense<0.000000e+00> : vector<1x128xf32>
    %50 = tpu.matmul %7, %49, %cst_19 {dimension_numbers = #tpu.dot_dimension_numbers<[1], [0], [0], [1], [0, 0, 1, 1], [], []>} : vector<1x16xf32>, vector<16x128xf32>, vector<1x128xf32> -> vector<1x128xf32>
    %c0_20 = arith.constant 0 : index
    %c0_21 = arith.constant 0 : index
    %51 = vector.load %arg5[%c0_20, %c0_21] : memref<1x128xf32, #tpu.memory_space<vmem>>, vector<1x128xf32>
    %52 = arith.addf %50, %51 : vector<1x128xf32>
    %c0_22 = arith.constant 0 : index
    %c0_23 = arith.constant 0 : index
    %53 = vector.load %arg6[%c0_22, %c0_23] : memref<32x128xf32, #tpu.memory_space<vmem>>, vector<32x128xf32>
    %cst_24 = arith.constant dense<0.000000e+00> : vector<8x128xf32>
    %54 = tpu.matmul %48, %53, %cst_24 {dimension_numbers = #tpu.dot_dimension_numbers<[1], [0], [0], [1], [0, 0, 1, 1], [], []>} : vector<8x32xf32>, vector<32x128xf32>, vector<8x128xf32> -> vector<8x128xf32>
    %55 = vector.extract_strided_slice %52 {offsets = [0, 0], sizes = [1, 96], strides = [1, 1]} : vector<1x128xf32> to vector<1x96xf32>
    %56 = vector.extract_strided_slice %54 {offsets = [0, 0], sizes = [1, 96], strides = [1, 1]} : vector<8x128xf32> to vector<1x96xf32>
    %57 = arith.addf %55, %56 : vector<1x96xf32>
    %58 = vector.extract_strided_slice %57 {offsets = [0, 0], sizes = [1, 32], strides = [1, 1]} : vector<1x96xf32> to vector<1x32xf32>
    %59 = arith.negf %58 : vector<1x32xf32>
    %60 = math.exp %59 : vector<1x32xf32>
    %cst_25 = arith.constant 1.000000e+00 : f32
    %61 = vector.broadcast %cst_25 : f32 to vector<1x32xf32>
    %62 = arith.addf %61, %60 : vector<1x32xf32>
    %63 = arith.divf %61, %62 : vector<1x32xf32>
    %64 = vector.extract_strided_slice %57 {offsets = [0, 32], sizes = [1, 32], strides = [1, 1]} : vector<1x96xf32> to vector<1x32xf32>
    %65 = arith.negf %64 : vector<1x32xf32>
    %66 = math.exp %65 : vector<1x32xf32>
    %cst_26 = arith.constant 1.000000e+00 : f32
    %67 = vector.broadcast %cst_26 : f32 to vector<1x32xf32>
    %68 = arith.addf %67, %66 : vector<1x32xf32>
    %69 = arith.divf %67, %68 : vector<1x32xf32>
    %70 = vector.extract_strided_slice %57 {offsets = [0, 64], sizes = [1, 32], strides = [1, 1]} : vector<1x96xf32> to vector<1x32xf32>
    %71 = math.tanh %70 : vector<1x32xf32>
    %72 = vector.extract_strided_slice %54 {offsets = [1, 96], sizes = [7, 32], strides = [1, 1]} : vector<8x128xf32> to vector<7x32xf32>
    %c0_27 = arith.constant 0 : index
    %c0_28 = arith.constant 0 : index
    %73 = vector.load %arg7[%c0_27, %c0_28] : memref<1x32xf32, #tpu.memory_space<vmem>>, vector<1x32xf32>
    %74 = vector.broadcast %73 : vector<1x32xf32> to vector<7x32xf32>
    %75 = arith.addf %72, %74 : vector<7x32xf32>
    %76 = vector.extract_strided_slice %52 {offsets = [0, 96], sizes = [1, 32], strides = [1, 1]} : vector<1x128xf32> to vector<1x32xf32>
    %77 = vector.broadcast %76 : vector<1x32xf32> to vector<7x32xf32>
    %78 = arith.addf %75, %77 : vector<7x32xf32>
    %79 = arith.negf %78 : vector<7x32xf32>
    %80 = math.exp %79 : vector<7x32xf32>
    %cst_29 = arith.constant 1.000000e+00 : f32
    %81 = vector.broadcast %cst_29 : f32 to vector<7x32xf32>
    %82 = arith.addf %81, %80 : vector<7x32xf32>
    %83 = arith.divf %81, %82 : vector<7x32xf32>
    %84 = arith.mulf %63, %71 : vector<1x32xf32>
    %85 = arith.mulf %83, %44 : vector<7x32xf32>
    %cst_30 = arith.constant dense<0.000000e+00> : vector<32xf32>
    %86 = vector.multi_reduction <add>, %85, %cst_30 [0] : vector<7x32xf32> to vector<32xf32>
    %87 = vector.shape_cast %86 : vector<32xf32> to vector<1x32xf32>
    %88 = arith.addf %84, %87 : vector<1x32xf32>
    %89 = math.tanh %88 : vector<1x32xf32>
    %90 = arith.mulf %69, %89 : vector<1x32xf32>
    %91 = tpu.concatenate %88, %90 in 1 : vector<1x32xf32>, vector<1x32xf32> -> vector<1x64xf32>
    %92 = arith.index_cast %arg0 : i32 to index
    %c0_31 = arith.constant 0 : index
    %c0_32 = arith.constant 0 : index
    %93 = vector.load %arg8[%92, %c0_31, %c0_32] : memref<7x1x64xf32, #tpu.memory_space<vmem>>, vector<1x1x64xf32>
    %94 = vector.shape_cast %93 : vector<1x1x64xf32> to vector<1x64xf32>
    %95 = vector.shape_cast %91 : vector<1x64xf32> to vector<1x1x64xf32>
    tpu.vector_store %arg8[%92, %c0_31, %c0_32], %95 {strides = array<i32>} : memref<7x1x64xf32, #tpu.memory_space<vmem>>, vector<1x1x64xf32>,
    return
  }
  func.func @transform_0(%arg0: i32, %arg1: memref<6xi32, #tpu.memory_space<smem>>, %arg2: memref<6x7xi32, #tpu.memory_space<smem>>) -> (i32, i32, i32) {
    %c0_i32 = arith.constant 0 : i32
    %c0_i32_0 = arith.constant 0 : i32
    %c0_i32_1 = arith.constant 0 : i32
    %c0_i32_2 = arith.constant 0 : i32
    return %c0_i32, %c0_i32_0, %c0_i32_1 : i32, i32, i32
  }
  func.func @transform_1(%arg0: i32, %arg1: memref<6xi32, #tpu.memory_space<smem>>, %arg2: memref<6x7xi32, #tpu.memory_space<smem>>) -> (i32, i32) {
    %c0_i32 = arith.constant 0 : i32
    %c0_i32_0 = arith.constant 0 : i32
    %c0_i32_1 = arith.constant 0 : i32
    return %c0_i32, %c0_i32_0 : i32, i32
  }
  func.func @transform_2(%arg0: i32, %arg1: memref<6xi32, #tpu.memory_space<smem>>, %arg2: memref<6x7xi32, #tpu.memory_space<smem>>) -> (i32, i32) {
    %c0_i32 = arith.constant 0 : i32
    %c0_i32_0 = arith.constant 0 : i32
    %c0_i32_1 = arith.constant 0 : i32
    return %c0_i32, %c0_i32_0 : i32, i32
  }
  func.func @transform_3(%arg0: i32, %arg1: memref<6xi32, #tpu.memory_space<smem>>, %arg2: memref<6x7xi32, #tpu.memory_space<smem>>) -> (i32, i32) {
    %c0_i32 = arith.constant 0 : i32
    %c0_i32_0 = arith.constant 0 : i32
    %c0_i32_1 = arith.constant 0 : i32
    return %c0_i32, %c0_i32_0 : i32, i32
  }
  func.func @transform_4(%arg0: i32, %arg1: memref<6xi32, #tpu.memory_space<smem>>, %arg2: memref<6x7xi32, #tpu.memory_space<smem>>) -> (i32, i32) {
    %c0_i32 = arith.constant 0 : i32
    %c0_i32_0 = arith.constant 0 : i32
    %c0_i32_1 = arith.constant 0 : i32
    return %c0_i32, %c0_i32_0 : i32, i32
  }
  func.func @transform_5(%arg0: i32, %arg1: memref<6xi32, #tpu.memory_space<smem>>, %arg2: memref<6x7xi32, #tpu.memory_space<smem>>) -> (i32, i32, i32) {
    %c0_i32 = arith.constant 0 : i32
    %c0_i32_0 = arith.constant 0 : i32
    %c0_i32_1 = arith.constant 0 : i32
    %c0_i32_2 = arith.constant 0 : i32
    return %c0_i32, %c0_i32_0, %c0_i32_1 : i32, i32, i32
  }
}

</mosaic_0001>

<llo_original>
// kernel: tree_lstm_pallas.1
$region0: #{tree_lstm_pallas.1}
  #allocation0 [shape = 'u32[]', space=smem, size = 0x4, offset = 0x4, fixed_abs, tag = 'smem constant byte address 0x4 - core index']
  #allocation1 [shape = 'u32[144,128]{1,0:T(1,128)}', space=vmem, size = 0x12000, scoped, tag = 'internal scratch']
  #allocation2 [shape = 's32[1]{0}', space=sflag, size = 0x4, scoped, tag = 'scoped memory for tree_lstm_pallas.1']
  #allocation3 [shape = 'u8[512]{0}', space=smem, size = 0x200, scoped, tag = 'prefetched SMEM operand 0']
  #allocation4 [shape = 'u8[4096]{0}', space=smem, size = 0x1000, scoped, tag = 'prefetched SMEM operand 1']
  %s0 = inlined_call_operand.vmem [shape: s32[6], index: 0, kind: input, shape index: {}]
  %s1 = inlined_call_operand.hbm [shape: s32[6,7], index: 1, kind: input, shape index: {}]
  %s2 = inlined_call_operand.vmem [shape: f32[8,1,16], index: 2, kind: input, shape index: {}]
  %s3 = inlined_call_operand.hbm [shape: f32[16,128], index: 3, kind: input, shape index: {}]
  %s4 = inlined_call_operand.vmem [shape: f32[1,128], index: 4, kind: input, shape index: {}]
  %s5 = inlined_call_operand.hbm [shape: f32[32,128], index: 5, kind: input, shape index: {}]
  %s6 = inlined_call_operand.vmem [shape: f32[1,32], index: 6, kind: input, shape index: {}]
  %s7 = inlined_call_operand.hbm [shape: f32[7,1,64], index: 7, kind: output, shape index: {}]
  %s8 = sld [smem:[#allocation0]]
  $region65: #{tree_lstm_pallas.1} parent=0
    _
  %s10 = ssub.s32 1, %s8
  %s11 = scalar_select 0, %s10, %s8
  %s12 = sshll.u32 %s0, 4
  %s13 = int_to_ptr.vmem [resolvable:$true] %s12
  %15 = dma.vmem_to_smem %s13, 16, [#allocation3], [#allocation2]
  %17 = dma.hbm_to_smem %s1, 128, [#allocation4], [#allocation2]
  %18 = dma.done [#allocation2], 144
  %19 = sfence
  $region1: #{tree_lstm_pallas.1} parent=0
    #allocation5 [shape = 'u8[8192]{0}', space=vmem, size = 0x2000, scoped, tag = 'input window, operand 3, single buffered']
    #allocation6 [shape = 's32[2]{0}', space=sflag, size = 0x8, scoped, tag = 'scoped memory for tree_lstm_pallas.1']
    #allocation7 [shape = 's32[2]{0}', space=sflag, size = 0x8, scoped, tag = 'scoped memory for tree_lstm_pallas.1']
    #allocation8 [shape = 'u8[16384]{0}', space=vmem, size = 0x4000, scoped, tag = 'input window, operand 5, single buffered']
    #allocation9 [shape = 's32[1]{0}', space=sflag, size = 0x4, scoped, tag = 'scoped memory for tree_lstm_pallas.1']
    #allocation10 [shape = 'u8[3584]{0}', space=vmem, size = 0x1000, scoped, tag = 'output window, operand 0, single buffered']
    %20 = vsyncpa [#allocation6], 0
    %21 = vsyncpa [#allocation9], 0
    %22 = vsyncpa [#allocation7], 0
    loop: start=0, step=1, limit=8
    $region2: #{tree_lstm_pallas.1} parent=1 // loop_pre_header
      _
    $region3: #{tree_lstm_pallas.1} parent=1 // loop_header
      %s24 = sphi 0, %s28
      %p25 = scmp.ge.s32.totalorder %s24, 8
      %s32 = sphi 0, %s32
      %s34 = sphi 0, %s32
      %s35 = sphi 0, %s34
      %s49 = sphi 0, %s35
      %s53 = sphi 0, %s53
      %s55 = sphi 0, %s53
      %s56 = sphi 0, %s55
      %s70 = sphi 0, %s56
      %s74 = sphi 0, %s74
      %s76 = sphi 0, %s74
      %s77 = sphi 0, %s76
      %s91 = sphi 0, %s77
      %s95 = sphi 0, %s95
      %s97 = sphi 0, %s95
      %s98 = sphi 0, %s97
      %s112 = sphi 0, %s98
      %s116 = sphi 0, %s116
      %s118 = sphi 0, %s116
      %s119 = sphi 0, %s118
      %s133 = sphi 0, %s119
      %s137 = sphi 0, %s137
      %s139 = sphi 0, %s137
      %s140 = sphi 0, %s139
      %s154 = sphi 0, %s140
    $region4: #{tree_lstm_pallas.1} parent=1 // loop_header_branch
      %27 = sbr.rel (%p25) target = $region8
    $region5: #{tree_lstm_pallas.1} parent=1 // loop_body
      %s29 = ssub.s32 %s24, 1
      %s30 = ssub.s32 %s24, 2
      %s31 = sadd.s32 %s24, 1
      %s33 = sadd.s32 %s32, 1
      %p36 = scmp.eq.s32.totalorder %s24, 5
      %p37 = scmp.ne.s32.totalorder %s32, %s34
      %p38 = scmp.eq.s32.totalorder %s24, 0
      %p39 = por %p37, %p38
      %p40 = scmp.ne.s32.totalorder %s32, %s34
      %p41 = scmp.eq.s32.totalorder %s29, 5
      %p42 = por %p40, %p41
      %p43 = scmp.ne.s32.totalorder %s34, %s35
      %p44 = scmp.eq.s32.totalorder %s29, 0
      %p45 = por %p43, %p44
      %p46 = scmp.ne.s32.totalorder %s34, %s35
      %p47 = scmp.eq.s32.totalorder %s30, 5
      %p48 = por %p46, %p47
      %p50 = scmp.ne.s32.totalorder %s35, %s49
      %p51 = scmp.eq.s32.totalorder %s30, 0
      %p52 = por %p50, %p51
      %s54 = sadd.s32 %s53, 1
      %p57 = scmp.eq.s32.totalorder %s24, 5
      %p58 = scmp.ne.s32.totalorder %s53, %s55
      %p59 = scmp.eq.s32.totalorder %s24, 0
      %p60 = por %p58, %p59
      %p61 = scmp.ne.s32.totalorder %s53, %s55
      %p62 = scmp.eq.s32.totalorder %s29, 5
      %p63 = por %p61, %p62
      %p64 = scmp.ne.s32.totalorder %s55, %s56
      %p65 = scmp.eq.s32.totalorder %s29, 0
      %p66 = por %p64, %p65
      %p67 = scmp.ne.s32.totalorder %s55, %s56
      %p68 = scmp.eq.s32.totalorder %s30, 5
      %p69 = por %p67, %p68
      %p71 = scmp.ne.s32.totalorder %s56, %s70
      %p72 = scmp.eq.s32.totalorder %s30, 0
      %p73 = por %p71, %p72
      %s75 = sadd.s32 %s74, 1
      %p78 = scmp.eq.s32.totalorder %s24, 5
      %p79 = scmp.ne.s32.totalorder %s74, %s76
      %p80 = scmp.eq.s32.totalorder %s24, 0
      %p81 = por %p79, %p80
      %p82 = scmp.ne.s32.totalorder %s74, %s76
      %p83 = scmp.eq.s32.totalorder %s29, 5
      %p84 = por %p82, %p83
      %p85 = scmp.ne.s32.totalorder %s76, %s77
      %p86 = scmp.eq.s32.totalorder %s29, 0
      %p87 = por %p85, %p86
      %p88 = scmp.ne.s32.totalorder %s76, %s77
      %p89 = scmp.eq.s32.totalorder %s30, 5
      %p90 = por %p88, %p89
      %p92 = scmp.ne.s32.totalorder %s77, %s91
      %p93 = scmp.eq.s32.totalorder %s30, 0
      %p94 = por %p92, %p93
      %s96 = sadd.s32 %s95, 1
      %p99 = scmp.eq.s32.totalorder %s24, 5
      %p100 = scmp.ne.s32.totalorder %s95, %s97
      %p101 = scmp.eq.s32.totalorder %s24, 0
      %p102 = por %p100, %p101
      %p103 = scmp.ne.s32.totalorder %s95, %s97
      %p104 = scmp.eq.s32.totalorder %s29, 5
      %p105 = por %p103, %p104
      %p106 = scmp.ne.s32.totalorder %s97, %s98
      %p107 = scmp.eq.s32.totalorder %s29, 0
      %p108 = por %p106, %p107
      %p109 = scmp.ne.s32.totalorder %s97, %s98
      %p110 = scmp.eq.s32.totalorder %s30, 5
      %p111 = por %p109, %p110
      %p113 = scmp.ne.s32.totalorder %s98, %s112
      %p114 = scmp.eq.s32.totalorder %s30, 0
      %p115 = por %p113, %p114
      %s117 = sadd.s32 %s116, 1
      %p120 = scmp.eq.s32.totalorder %s24, 5
      %p121 = scmp.ne.s32.totalorder %s116, %s118
      %p122 = scmp.eq.s32.totalorder %s24, 0
      %p123 = por %p121, %p122
      %p124 = scmp.ne.s32.totalorder %s116, %s118
      %p125 = scmp.eq.s32.totalorder %s29, 5
      %p126 = por %p124, %p125
      %p127 = scmp.ne.s32.totalorder %s118, %s119
      %p128 = scmp.eq.s32.totalorder %s29, 0
      %p129 = por %p127, %p128
      %p130 = scmp.ne.s32.totalorder %s118, %s119
      %p131 = scmp.eq.s32.totalorder %s30, 5
      %p132 = por %p130, %p131
      %p134 = scmp.ne.s32.totalorder %s119, %s133
      %p135 = scmp.eq.s32.totalorder %s30, 0
      %p136 = por %p134, %p135
      %s138 = sadd.s32 %s137, 1
      %p141 = scmp.eq.s32.totalorder %s24, 5
      %p142 = scmp.ne.s32.totalorder %s137, %s139
      %p143 = scmp.eq.s32.totalorder %s24, 0
      %p144 = por %p142, %p143
      %p145 = scmp.ne.s32.totalorder %s137, %s139
      %p146 = scmp.eq.s32.totalorder %s29, 5
      %p147 = por %p145, %p146
      %p148 = scmp.ne.s32.totalorder %s139, %s140
      %p149 = scmp.eq.s32.totalorder %s29, 0
      %p150 = por %p148, %p149
      %p151 = scmp.ne.s32.totalorder %s139, %s140
      %p152 = scmp.eq.s32.totalorder %s30, 5
      %p153 = por %p151, %p152
      %p155 = scmp.ne.s32.totalorder %s140, %s154
      %p156 = scmp.eq.s32.totalorder %s30, 0
      %p157 = por %p155, %p156
      %p158 = scmp.le.s32.totalorder 1, %s24
      %p159 = scmp.lt.s32.totalorder %s24, 7
      %p160 = pnand %p158, %p159
      %p161 = pneg %p160
      // Predicated region
      $region9: #{tree_lstm_pallas.1} parent=5 // pred_check
        _
      $region10: #{tree_lstm_pallas.1} parent=5 // pred_check_branch
        %163 = sbr.rel (%p160) target = $region12
      $region11: #{tree_lstm_pallas.1} parent=5 // pred_region
        %s164 = ssub.s32 %s24, 1
        // Predicated region
        $region13: #{tree_lstm_pallas.1} parent=11 // pred_check
          %p165 = pneg %p45
        $region14: #{tree_lstm_pallas.1} parent=11 // pred_check_branch
          %167 = sbr.rel (%p165) target = $region16
        $region15: #{tree_lstm_pallas.1} parent=11 // pred_region
          _
        $region16: #{tree_lstm_pallas.1} parent=11 // pred_fallthru
          _
        // Predicated region
        $region17: #{tree_lstm_pallas.1} parent=11 // pred_check
          %p168 = pneg %p66
        $region18: #{tree_lstm_pallas.1} parent=11 // pred_check_branch
          %170 = sbr.rel (%p168) target = $region20
        $region19: #{tree_lstm_pallas.1} parent=11 // pred_region
          %s172 = ssub.s32 256, 256
          %173 = vsyncadd [#allocation6], %s172
          %s174 = sshll.u32 [#allocation5], 4
          %s175 = int_to_ptr.vmem [resolvable:$true] %s174
          %180 = dma.hbm_to_vmem [thread:$0]  %s3, 256, %s175, [#allocation6], 128, 128, 8
        $region20: #{tree_lstm_pallas.1} parent=11 // pred_fallthru
          _
        // Predicated region
        $region21: #{tree_lstm_pallas.1} parent=11 // pred_check
          %p181 = pneg %p87
        $region22: #{tree_lstm_pallas.1} parent=11 // pred_check_branch
          %183 = sbr.rel (%p181) target = $region24
        $region23: #{tree_lstm_pallas.1} parent=11 // pred_region
          _
        $region24: #{tree_lstm_pallas.1} parent=11 // pred_fallthru
          _
        // Predicated region
        $region25: #{tree_lstm_pallas.1} parent=11 // pred_check
          %p184 = pneg %p108
        $region26: #{tree_lstm_pallas.1} parent=11 // pred_check_branch
          %186 = sbr.rel (%p184) target = $region28
        $region27: #{tree_lstm_pallas.1} parent=11 // pred_region
          %s188 = ssub.s32 512, 512
          %189 = vsyncadd [#allocation9], %s188
          %s190 = sshll.u32 [#allocation8], 4
          %s191 = int_to_ptr.vmem [resolvable:$true] %s190
          %196 = dma.hbm_to_vmem [thread:$0]  %s5, 512, %s191, [#allocation9], 128, 128, 8
        $region28: #{tree_lstm_pallas.1} parent=11 // pred_fallthru
          _
        // Predicated region
        $region29: #{tree_lstm_pallas.1} parent=11 // pred_check
          %p197 = pneg %p129
        $region30: #{tree_lstm_pallas.1} parent=11 // pred_check_branch
          %199 = sbr.rel (%p197) target = $region32
        $region31: #{tree_lstm_pallas.1} parent=11 // pred_region
          _
        $region32: #{tree_lstm_pallas.1} parent=11 // pred_fallthru
          _
      $region12: #{tree_lstm_pallas.1} parent=5 // pred_fallthru
        _
      %p200 = scmp.lt.s32.totalorder %s24, 6
      // Predicated region
      $region33: #{tree_lstm_pallas.1} parent=5 // pred_check
        %p201 = pneg %p200
      $region34: #{tree_lstm_pallas.1} parent=5 // pred_check_branch
        %203 = sbr.rel (%p201) target = $region36
      $region35: #{tree_lstm_pallas.1} parent=5 // pred_region
        _
      $region36: #{tree_lstm_pallas.1} parent=5 // pred_fallthru
        _
      %p204 = scmp.le.s32.totalorder 1, %s24
      %p205 = scmp.lt.s32.totalorder %s24, 7
      %p206 = pnand %p204, %p205
      %p207 = pneg %p206
      // Predicated region
      $region37: #{tree_lstm_pallas.1} parent=5 // pred_check
        _
      $region38: #{tree_lstm_pallas.1} parent=5 // pred_check_branch
        %209 = sbr.rel (%p206) target = $region40
      $region39: #{tree_lstm_pallas.1} parent=5 // pred_region
        %s210 = ssub.s32 %s24, 1
        // Predicated region
        $region41: #{tree_lstm_pallas.1} parent=39 // pred_check
          %p211 = pneg %p66
        $region42: #{tree_lstm_pallas.1} parent=39 // pred_check_branch
          %213 = sbr.rel (%p211) target = $region44
        $region43: #{tree_lstm_pallas.1} parent=39 // pred_region
          %214 = dma.done [#allocation6], 256
        $region44: #{tree_lstm_pallas.1} parent=39 // pred_fallthru
          _
        // Predicated region
        $region45: #{tree_lstm_pallas.1} parent=39 // pred_check
          %p215 = pneg %p108
        $region46: #{tree_lstm_pallas.1} parent=39 // pred_check_branch
          %217 = sbr.rel (%p215) target = $region48
        $region47: #{tree_lstm_pallas.1} parent=39 // pred_region
          %218 = dma.done [#allocation9], 512
        $region48: #{tree_lstm_pallas.1} parent=39 // pred_fallthru
          _
        %p219 = pneg %p45
        %p220 = pneg %p42
        %p221 = pneg %p66
        %p222 = pneg %p63
        %p223 = pneg %p87
        %p224 = pneg %p84
        %p225 = pneg %p108
        %p226 = pneg %p105
        %p227 = pneg %p129
        %p228 = pneg %p126
        %p229 = pneg %p150
        %p230 = pneg %p147
        %p231 = scmp.eq.s32.totalorder %s29, 0
        // Predicated region
        $region49: #{tree_lstm_pallas.1} parent=39 // pred_check
          %p232 = pneg %p231
        $region50: #{tree_lstm_pallas.1} parent=39 // pred_check_branch
          %234 = sbr.rel (%p232) target = $region52
        $region51: #{tree_lstm_pallas.1} parent=39 // pred_region
          %vm235 = vcmask 516096
          %236 = vst.msk [vmem:[#allocation10] sm:$0x1] %vm235, 0.0
          %237 = vst.msk [vmem:[#allocation10 + $0x1] sm:$0x1] %vm235, 0.0
          %238 = vst.msk [vmem:[#allocation10 + $0x2] sm:$0x1] %vm235, 0.0
          %239 = vst.msk [vmem:[#allocation10 + $0x3] sm:$0x1] %vm235, 0.0
          %240 = vst.msk [vmem:[#allocation10 + $0x4] sm:$0x1] %vm235, 0.0
          %241 = vst.msk [vmem:[#allocation10 + $0x5] sm:$0x1] %vm235, 0.0
          %242 = vst.msk [vmem:[#allocation10 + $0x6] sm:$0x1] %vm235, 0.0
        $region52: #{tree_lstm_pallas.1} parent=39 // pred_fallthru
          _
        %s243 = sld [smem:[#allocation3 + %s29]]
        %s244 = scalar_lea.vmem %s2, %s243
        %v245 = vld [vmem:[%s244] sm:$0x1]
        %s246 = smul.u32 %s29, 128
        %s247 = sld [smem:[#allocation4 + %s246]]
        %s248 = scalar_lea.vmem [#allocation10], %s247
        %v249 = vld [vmem:[%s248] sm:$0x1]
        %s250 = sadd.s32 %s246, 1
        %s251 = sld [smem:[#allocation4 + %s250]]
        %s252 = scalar_lea.vmem [#allocation10], %s251
        %v253 = vld [vmem:[%s252] sm:$0x1]
        %s254 = sadd.s32 %s246, 2
        %s255 = sld [smem:[#allocation4 + %s254]]
        %s256 = scalar_lea.vmem [#allocation10], %s255
        %v257 = vld [vmem:[%s256] sm:$0x1]
        %s258 = sadd.s32 %s246, 3
        %s259 = sld [smem:[#allocation4 + %s258]]
        %s260 = scalar_lea.vmem [#allocation10], %s259
        %v261 = vld [vmem:[%s260] sm:$0x1]
        %s262 = sadd.s32 %s246, 4
        %s263 = sld [smem:[#allocation4 + %s262]]
        %s264 = scalar_lea.vmem [#allocation10], %s263
        %v265 = vld [vmem:[%s264] sm:$0x1]
        %s266 = sadd.s32 %s246, 5
        %s267 = sld [smem:[#allocation4 + %s266]]
        %s268 = scalar_lea.vmem [#allocation10], %s267
        %v269 = vld [vmem:[%s268] sm:$0x1]
        %s270 = sadd.s32 %s246, 6
        %s271 = sld [smem:[#allocation4 + %s270]]
        %s272 = scalar_lea.vmem [#allocation10], %s271
        %v273 = vld [vmem:[%s272] sm:$0x1]
        %v275 = vlaneseq
        %v276 = vshrl.u32 %v275, 7
        %v277 = vsub.s32 0, %v276
        %v278 = vrot.slane %v253, %v277
        %v281 = vlaneseq
        %v282 = vshrl.u32 %v281, 7
        %v283 = vsub.s32 0, %v282
        %v284 = vrot.slane %v257, %v283
        %v287 = vlaneseq
        %v288 = vshrl.u32 %v287, 7
        %v289 = vsub.s32 0, %v288
        %v290 = vrot.slane %v261, %v289
        %v293 = vlaneseq
        %v294 = vshrl.u32 %v293, 7
        %v295 = vsub.s32 0, %v294
        %v296 = vrot.slane %v265, %v295
        %v299 = vlaneseq
        %v300 = vshrl.u32 %v299, 7
        %v301 = vsub.s32 0, %v300
        %v302 = vrot.slane %v269, %v301
        %v305 = vlaneseq
        %v306 = vshrl.u32 %v305, 7
        %v307 = vsub.s32 0, %v306
        %v308 = vrot.slane %v273, %v307
        %vm310 = vcmask 1040384
        %v311 = vsel %vm310, %v249, %v278
        %vm312 = vcmask 1041408
        %v313 = vsel %vm312, %v311, %v284
        %vm314 = vcmask 1042432
        %v315 = vsel %vm314, %v313, %v290
        %vm316 = vcmask 1043456
        %v317 = vsel %vm316, %v315, %v296
        %vm318 = vcmask 1044480
        %v319 = vsel %vm318, %v317, %v302
        %vm320 = vcmask 1045504
        %v321 = vsel %vm320, %v319, %v308
        %vm322 = vcmask 522496
        %v323 = vsel %vm322, %v321, 0.0
        %v324 = vrot.slane %v323, 4
        %v325 = vadd.f32 %v323, %v324
        %v326 = vrot.slane %v325, 2
        %v327 = vadd.f32 %v325, %v326
        %v328 = vrot.slane %v327, 1
        %v329 = vadd.f32 %v327, %v328
        %v331 = vrot.slane %v321, 7
        %v333 = vsel %vm310, %v329, %v331
        %v334 = vld [vmem:[#allocation5] sm:$0xff]
        %v335 = vld [vmem:[#allocation5 + $0x8] sm:$0xff]
        %v336 = vld [vmem:[%s4] sm:$0x1]
        %vm337 = vcmask 130048
        %v339 = vsel %vm337, %v245, 0
        %341 = vmatprep.subr.mxu0 0.0
        %342 = vmatpush1.msra.mxu0 %v334
        %343 = vmatprep.subr.mxu0 0.0
        %344 = vmatpush1.msra.mxu0 %v335
        %345 = vmatprep.subr.mxu0 0.0
        %346 = vmatpush1.msra.mxu0 0.0
        %347 = vmatprep.subr.mxu0 0.0
        %348 = vmatpush1.msra.mxu0 0.0
        %349 = vmatprep.subr.mxu0 0.0
        %350 = vmatpush1.msra.mxu0 0.0
        %351 = vmatprep.subr.mxu0 0.0
        %352 = vmatpush1.msra.mxu0 0.0
        %353 = vmatprep.subr.mxu0 0.0
        %354 = vmatpush1.msra.mxu0 0.0
        %355 = vmatprep.subr.mxu0 0.0
        %356 = vmatpush1.msra.mxu0 0.0
        %357 = vmatprep.subr.mxu0 0.0
        %358 = vmatpush1.msra.mxu0 0.0
        %359 = vmatprep.subr.mxu0 0.0
        %360 = vmatpush1.msra.mxu0 0.0
        %361 = vmatprep.subr.mxu0 0.0
        %362 = vmatpush1.msra.mxu0 0.0
        %363 = vmatprep.subr.mxu0 0.0
        %364 = vmatpush1.msra.mxu0 0.0
        %365 = vmatprep.subr.mxu0 0.0
        %366 = vmatpush1.msra.mxu0 0.0
        %367 = vmatprep.subr.mxu0 0.0
        %368 = vmatpush1.msra.mxu0 0.0
        %369 = vmatprep.subr.mxu0 0.0
        %370 = vmatpush1.msra.mxu0 0.0
        %371 = vmatprep.subr.mxu0 0.0
        %372 = vmatpush1.msra.mxu0 0.0
        %373 = vmatprep.subr.mxu0 0.0
        %374 = vmatpush1.msra.mxu0 0.0
        %375 = vmatprep.subr.mxu0 0.0
        %376 = vmatpush1.msra.mxu0 0.0
        %377 = vmatprep.subr.mxu0 0.0
        %378 = vmatpush1.msra.mxu0 0.0
        %379 = vmatprep.subr.mxu0 0.0
        %380 = vmatpush1.msra.mxu0 0.0
        %381 = vmatprep.subr.mxu0 0.0
        %382 = vmatpush1.msra.mxu0 0.0
        %383 = vmatprep.subr.mxu0 0.0
        %384 = vmatpush1.msra.mxu0 0.0
        %385 = vmatprep.subr.mxu0 0.0
        %386 = vmatpush1.msra.mxu0 0.0
        %387 = vmatprep.subr.mxu0 0.0
        %388 = vmatpush1.msra.mxu0 0.0
        %389 = vmatprep.subr.mxu0 0.0
        %390 = vmatpush1.msra.mxu0 0.0
        %391 = vmatprep.subr.mxu0 0.0
        %392 = vmatpush1.msra.mxu0 0.0
        %393 = vmatprep.subr.mxu0 0.0
        %394 = vmatpush1.msra.mxu0 0.0
        %395 = vmatprep.subr.mxu0 0.0
        %396 = vmatpush1.msra.mxu0 0.0
        %397 = vmatprep.subr.mxu0 0.0
        %398 = vmatpush1.msra.mxu0 0.0
        %399 = vmatprep.subr.mxu0 0.0
        %400 = vmatpush1.msra.mxu0 0.0
        %401 = vmatprep.subr.mxu0 0.0
        %402 = vmatpush1.msra.mxu0 0.0
        %403 = vmatprep.subr.mxu0 0.0
        %404 = vmatpush1.msra.mxu0 0.0
        %405 = vmatprep.mubr.f32.mxu0 0.0
        %406 = vmatmul.mubr.f32.gmra.mrb[0].mxu0 %v339
        %v407 = vpop.f32.mrb[0].mxu0
        %v408 = vadd.f32 %v336, %v407
        %v409 = vpop.f32.mrb[0].mxu0
        %410 = vdwg.mxu0
        %v411 = vld [vmem:[#allocation8] sm:$0xff]
        %v412 = vld [vmem:[#allocation8 + $0x8] sm:$0xff]
        %v413 = vld [vmem:[#allocation8 + $0x10] sm:$0xff]
        %v414 = vld [vmem:[#allocation8 + $0x18] sm:$0xff]
        %416 = vrot.lane.b32.xlu0 %v333, 96
        %v417 = vpop.permute.xlu0 %416
        %vm418 = vcmask 261120
        %v419 = vsel %vm418, %v417, 0
        %421 = vmatprep.subr.mxu0 0.0
        %422 = vmatpush1.msra.mxu0 %v411
        %423 = vmatprep.subr.mxu0 0.0
        %424 = vmatpush1.msra.mxu0 %v412
        %425 = vmatprep.subr.mxu0 0.0
        %426 = vmatpush1.msra.mxu0 %v413
        %427 = vmatprep.subr.mxu0 0.0
        %428 = vmatpush1.msra.mxu0 %v414
        %429 = vmatprep.subr.mxu0 0.0
        %430 = vmatpush1.msra.mxu0 0.0
        %431 = vmatprep.subr.mxu0 0.0
        %432 = vmatpush1.msra.mxu0 0.0
        %433 = vmatprep.subr.mxu0 0.0
        %434 = vmatpush1.msra.mxu0 0.0
        %435 = vmatprep.subr.mxu0 0.0
        %436 = vmatpush1.msra.mxu0 0.0
        %437 = vmatprep.subr.mxu0 0.0
        %438 = vmatpush1.msra.mxu0 0.0
        %439 = vmatprep.subr.mxu0 0.0
        %440 = vmatpush1.msra.mxu0 0.0
        %441 = vmatprep.subr.mxu0 0.0
        %442 = vmatpush1.msra.mxu0 0.0
        %443 = vmatprep.subr.mxu0 0.0
        %444 = vmatpush1.msra.mxu0 0.0
        %445 = vmatprep.subr.mxu0 0.0
        %446 = vmatpush1.msra.mxu0 0.0
        %447 = vmatprep.subr.mxu0 0.0
        %448 = vmatpush1.msra.mxu0 0.0
        %449 = vmatprep.subr.mxu0 0.0
        %450 = vmatpush1.msra.mxu0 0.0
        %451 = vmatprep.subr.mxu0 0.0
        %452 = vmatpush1.msra.mxu0 0.0
        %453 = vmatprep.subr.mxu0 0.0
        %454 = vmatpush1.msra.mxu0 0.0
        %455 = vmatprep.subr.mxu0 0.0
        %456 = vmatpush1.msra.mxu0 0.0
        %457 = vmatprep.subr.mxu0 0.0
        %458 = vmatpush1.msra.mxu0 0.0
        %459 = vmatprep.subr.mxu0 0.0
        %460 = vmatpush1.msra.mxu0 0.0
        %461 = vmatprep.subr.mxu0 0.0
        %462 = vmatpush1.msra.mxu0 0.0
        %463 = vmatprep.subr.mxu0 0.0
        %464 = vmatpush1.msra.mxu0 0.0
        %465 = vmatprep.subr.mxu0 0.0
        %466 = vmatpush1.msra.mxu0 0.0
        %467 = vmatprep.subr.mxu0 0.0
        %468 = vmatpush1.msra.mxu0 0.0
        %469 = vmatprep.subr.mxu0 0.0
        %470 = vmatpush1.msra.mxu0 0.0
        %471 = vmatprep.subr.mxu0 0.0
        %472 = vmatpush1.msra.mxu0 0.0
        %473 = vmatprep.subr.mxu0 0.0
        %474 = vmatpush1.msra.mxu0 0.0
        %475 = vmatprep.subr.mxu0 0.0
        %476 = vmatpush1.msra.mxu0 0.0
        %477 = vmatprep.subr.mxu0 0.0
        %478 = vmatpush1.msra.mxu0 0.0
        %479 = vmatprep.subr.mxu0 0.0
        %480 = vmatpush1.msra.mxu0 0.0
        %481 = vmatprep.subr.mxu0 0.0
        %482 = vmatpush1.msra.mxu0 0.0
        %483 = vmatprep.subr.mxu0 0.0
        %484 = vmatpush1.msra.mxu0 0.0
        %485 = vmatprep.mubr.f32.mxu0 0.0
        %486 = vmatmul.mubr.f32.gmra.mrb[0].mxu0 %v419
        %v487 = vpop.f32.mrb[0].mxu0
        %v488 = vadd.f32 0.0, %v487
        %v489 = vpop.f32.mrb[0].mxu0
        %490 = vdwg.mxu0
        %v491 = vadd.f32 %v408, %v488
        %v492 = vxor.u32 %v491, 2147483648
        %v493 = vmul.f32 %v492, 1.442695
        %v494 = vpow.pop %v493
        %v495 = vadd.f32 %v494, 1.0
        %v496 = vrcp.pop %v495
        %v497 = vmul.f32 1.0, %v496
        %v498 = vtanh.pop %v491
        %v499 = vld [vmem:[%s6] sm:$0x1]
        %v501 = vlaneseq
        %v502 = vshrl.u32 %v501, 7
        %v503 = vsub.s32 0, %v502
        %v504 = vrot.slane %v499, %v503
        %505 = vrot.lane.b32.xlu0 %v504, 96
        %v506 = vpop.permute.xlu0 %505
        %v508 = vadd.f32 %v488, %v506
        %v509 = vlaneseq
        %v510 = vshrl.u32 %v509, 7
        %v511 = vsub.s32 0, %v510
        %v512 = vrot.slane %v408, %v511
        %v513 = vadd.f32 %v508, %v512
        %v514 = vxor.u32 %v513, 2147483648
        %v515 = vmul.f32 %v514, 1.442695
        %v516 = vpow.pop %v515
        %v517 = vadd.f32 %v516, 1.0
        %v518 = vrcp.pop %v517
        %v519 = vmul.f32 1.0, %v518
        %521 = vrot.lane.b32.xlu0 %v498, 64
        %v522 = vpop.permute.xlu0 %521
        %v524 = vmul.f32 %v497, %v522
        %525 = vrot.lane.b32.xlu0 %v331, 96
        %v526 = vpop.permute.xlu0 %525
        %v528 = vmul.f32 %v519, %v526
        %v530 = vrot.slane %v528, 1
        %vm532 = vcmask 1047296
        %v533 = vsel %vm532, %v530, 0.0
        %v534 = vrot.slane %v533, 4
        %v535 = vadd.f32 %v533, %v534
        %v536 = vrot.slane %v535, 2
        %v537 = vadd.f32 %v535, %v536
        %v538 = vrot.slane %v537, 1
        %v539 = vadd.f32 %v537, %v538
        %541 = vrot.lane.b32.xlu0 %v539, 32
        %v542 = vpop.permute.xlu0 %541
        %v544 = vadd.f32 %v524, %v542
        %v545 = vtanh.pop %v544
        %547 = vrot.lane.b32.xlu0 %v545, 32
        %v548 = vpop.permute.xlu0 %547
        %v550 = vmul.f32 %v497, %v548
        %v551 = vsel %vm418, %v544, %v550
        %s552 = scalar_lea.vmem [#allocation10], %s29
        %vm553 = vcmask 516096
        %554 = vst.msk [vmem:[%s552] sm:$0x1] %vm553, %v551
        // Predicated region
        $region53: #{tree_lstm_pallas.1} parent=39 // pred_check
          %p555 = pneg %p147
        $region54: #{tree_lstm_pallas.1} parent=39 // pred_check_branch
          %557 = sbr.rel (%p555) target = $region56
        $region55: #{tree_lstm_pallas.1} parent=39 // pred_region
          %s559 = ssub.s32 112, 112
          %560 = vsyncadd [#allocation7], %s559
          %s561 = sshll.u32 [#allocation10], 4
          %s562 = int_to_ptr.vmem [resolvable:$true] %s561
          %567 = dma.vmem_to_hbm [thread:$0]  %s562, 112, %s7, [#allocation7], 16, 16, 1
        $region56: #{tree_lstm_pallas.1} parent=39 // pred_fallthru
          _
        // Predicated region
        $region57: #{tree_lstm_pallas.1} parent=39 // pred_check
          %p568 = pneg %p147
        $region58: #{tree_lstm_pallas.1} parent=39 // pred_check_branch
          %570 = sbr.rel (%p568) target = $region60
        $region59: #{tree_lstm_pallas.1} parent=39 // pred_region
          %571 = dma.done [#allocation7], 112
        $region60: #{tree_lstm_pallas.1} parent=39 // pred_fallthru
          _
      $region40: #{tree_lstm_pallas.1} parent=5 // pred_fallthru
        _
      %p572 = scmp.le.s32.totalorder 2, %s24
      // Predicated region
      $region61: #{tree_lstm_pallas.1} parent=5 // pred_check
        %p573 = pneg %p572
      $region62: #{tree_lstm_pallas.1} parent=5 // pred_check_branch
        %575 = sbr.rel (%p573) target = $region64
      $region63: #{tree_lstm_pallas.1} parent=5 // pred_region
        %s576 = ssub.s32 %s24, 2
      $region64: #{tree_lstm_pallas.1} parent=5 // pred_fallthru
        _
    $region6: #{tree_lstm_pallas.1} parent=1 // loop_footer
      %s28 = sadd.s32 1, %s24
    $region7: #{tree_lstm_pallas.1} parent=1 // loop_footer_branch
      %23 = sbr.rel target = $region3
    $region8: #{tree_lstm_pallas.1} parent=1 // loop_exit
      _
    %577 = vsyncpa [#allocation6], 1
    %s578 = scalar_lea.sflag [#allocation6], 1
    %579 = vsyncpa %s578, 1
    %580 = vsyncpa [#allocation9], 1
    %581 = vsyncpa [#allocation7], 1
    %s582 = scalar_lea.sflag [#allocation7], 1
    %583 = vsyncpa %s582, 1

</llo_original>
